<compile_context>
chip_gen: v7x
topology: tpu7x:2x2x1
jax: 0.10.0
libtpu: 0.0.40
codegen_flags: <defaults>
</compile_context>

<pallas_src>
import functools

import jax
import jax.numpy as jnp
from jax import lax
from jax.experimental import pallas as pl
from jax.experimental.pallas import tpu as pltpu  # noqa: F401  (TPU backend)

BN_EPS = 1e-5
NEG_BIG = -1e30  # pads logit lanes so exp() -> 0 and softmax ignores them


def _cls_kernel(x_ref, w1_ref, params_ref, w2_ref,
                bn_ref, logits_ref, probs_ref, *, bottle, out_pad):
    # Packed params rows: 0 = gamma, 1 = beta, 2 = b2 (padded with -1e30).
    gamma = params_ref[0:1, :bottle]
    beta = params_ref[1:2, :bottle]
    b2 = params_ref[2:3, :out_pad]

    # ---- bottleneck Linear: h = x @ W1 (MXU, f32 accumulation).
    # b1 is omitted: it cancels exactly in the BatchNorm mean subtraction.
    h = jnp.dot(x_ref[...], w1_ref[...], preferred_element_type=jnp.float32)

    # ---- BatchNorm1d (training semantics: per-batch mean / biased var) ----
    mean = jnp.mean(h, axis=0, keepdims=True)
    centered = h - mean
    var = jnp.mean(centered * centered, axis=0, keepdims=True)
    scale = lax.rsqrt(var + BN_EPS) * gamma          # [1, bottle] (fold gamma)
    hn = centered * scale + beta
    bn_ref[...] = hn

    # ---- fc Linear: logits = hn @ W2_pad + b2_pad (lane-dense [B, out_pad]) ----
    logits = jnp.dot(hn, w2_ref[...], preferred_element_type=jnp.float32) + b2
    logits_ref[...] = logits

    # ---- softmax along last dim (padded lanes carry -1e30 -> exp == 0) ----
    m = jnp.max(logits, axis=-1, keepdims=True)
    e = jnp.exp(logits - m)
    denom = jnp.sum(e, axis=-1, keepdims=True)
    probs_ref[...] = e / denom   # exact divide on [B,1]; rows sum to 1


def cls_prepare_params(w1, b1, gamma, beta, w2, b2):
    """One-time packing of weights for the kernel (cache the result).

    b1 is accepted for API fidelity but unused: it cancels in BatchNorm's mean
    subtraction, so none of bn/logits/probs depend on it.
    """
    del b1
    bottle, out_dim = w2.shape
    out_pad = max(128, ((out_dim + 127) // 128) * 128)
    P = max(bottle, out_pad)

    # fc weight padded with zero columns; fc bias padded with -1e30 lanes.
    w2_p = jnp.pad(w2.astype(jnp.float32), ((0, 0), (0, out_pad - out_dim)))
    b2_row = jnp.pad(b2.reshape(-1).astype(jnp.float32),
                     (0, out_pad - out_dim), constant_values=NEG_BIG)

    def row(v, width):
        return jnp.pad(v.reshape(-1).astype(jnp.float32), (0, P - width))

    params = jnp.stack([row(gamma, bottle),
                        row(beta, bottle),
                        row(b2_row, out_pad)])          # [3, P]
    return w1.astype(jnp.float32), params, w2_p, out_dim


@functools.partial(jax.jit, static_argnames=("out_dim",))
def cls_forward(x, w1, params, w2_p, *, out_dim):
    """Returns (x, bn_out, logits, probs) mirroring the `out` list in forward()."""
    B, in_dim = x.shape
    bottle = w1.shape[1]
    out_pad = w2_p.shape[1]
    P = params.shape[1]

    full = lambda shape: pl.BlockSpec(shape, lambda: tuple(0 for _ in shape))

    bn_out, logits_p, probs_p = pl.pallas_call(
        functools.partial(_cls_kernel, bottle=bottle, out_pad=out_pad),
        out_shape=(
            jax.ShapeDtypeStruct((B, bottle), jnp.float32),
            jax.ShapeDtypeStruct((B, out_pad), jnp.float32),
            jax.ShapeDtypeStruct((B, out_pad), jnp.float32),
        ),
        grid=(),
        in_specs=[
            full((B, in_dim)),
            full((in_dim, bottle)),
            full((3, P)),
            full((bottle, out_pad)),
        ],
        out_specs=(
            full((B, bottle)),
            full((B, out_pad)),
            full((B, out_pad)),
        ),
    )(x, w1, params, w2_p)

    return x, bn_out, logits_p[:, :out_dim], probs_p[:, :out_dim]


def _reference(x, w1, b1, gamma, beta, w2, b2):
    h = x @ w1 + b1
    mean = h.mean(axis=0, keepdims=True)
    var = ((h - mean) ** 2).mean(axis=0, keepdims=True)
    hn = (h - mean) / jnp.sqrt(var + BN_EPS) * gamma + beta
    logits = hn @ w2 + b2
    probs = jax.nn.softmax(logits, axis=-1)
    return x, hn, logits, probs


if __name__ == "__main__":
    # Small shapes consistent with the module: in_dim=32, bottleneck=256
    # (default), out_dim=16, batch=8 (BatchNorm1d training mode needs batch>1).
    B, IN_DIM, BOTTLE, OUT_DIM = 8, 32, 256, 16

    key = jax.random.PRNGKey(0)
    kx, kw1, kb1, kg, kbt, kw2, kb2 = jax.random.split(key, 7)

    x = jax.random.normal(kx, (B, IN_DIM), dtype=jnp.float32)
    # Linear weights stored pre-transposed as [in_features, out_features].
    w1 = 0.05 * jax.random.normal(kw1, (IN_DIM, BOTTLE), dtype=jnp.float32)
    b1 = 0.05 * jax.random.normal(kb1, (1, BOTTLE), dtype=jnp.float32)
    gamma = 1.0 + 0.1 * jax.random.normal(kg, (1, BOTTLE), dtype=jnp.float32)
    beta = 0.1 * jax.random.normal(kbt, (1, BOTTLE), dtype=jnp.float32)
    w2 = 0.05 * jax.random.normal(kw2, (BOTTLE, OUT_DIM), dtype=jnp.float32)
    b2 = 0.05 * jax.random.normal(kb2, (1, OUT_DIM), dtype=jnp.float32)

    # One-time parameter packing (would be cached alongside the weights).
    w1_k, params, w2_p, out_dim = cls_prepare_params(w1, b1, gamma, beta, w2, b2)

    outs = cls_forward(x, w1_k, params, w2_p, out_dim=out_dim)
    outs = jax.block_until_ready(outs)

    refs = _reference(x, w1, b1, gamma, beta, w2, b2)
    names = ("x", "bn", "logits", "probs")
    tols = (2e-4, 2e-4, 2e-4, 2e-4)
    for name, got, want, tol in zip(names, outs, refs, tols):
        err = float(jnp.max(jnp.abs(got - want)))
        assert jnp.allclose(got, want, atol=tol, rtol=tol), (name, err)
    # probs rows sum to ~1 (exact divide -> only f32 rounding slack).
    assert jnp.allclose(jnp.sum(outs[3], axis=-1), 1.0, atol=1e-4)

    print("KERNEL_OK")
</pallas_src>

<mosaic_0001>
module attributes {stable_mosaic.version = 11 : i64} {
  func.func @_cls_kernel(%arg0: memref<8x32xf32, #tpu.memory_space<vmem>>, %arg1: memref<32x256xf32, #tpu.memory_space<vmem>>, %arg2: memref<3x256xf32, #tpu.memory_space<vmem>>, %arg3: memref<256x128xf32, #tpu.memory_space<vmem>>, %arg4: memref<8x256xf32, #tpu.memory_space<vmem>>, %arg5: memref<8x128xf32, #tpu.memory_space<vmem>>, %arg6: memref<8x128xf32, #tpu.memory_space<vmem>>) attributes {dimension_semantics = [], scalar_prefetch = 0 : i64, scratch_operands = 0 : i64, tpu.core_type = #tpu.core_type<tc>} {
    %c0 = arith.constant 0 : index
    %c0_0 = arith.constant 0 : index
    %0 = vector.load %arg2[%c0, %c0_0] : memref<3x256xf32, #tpu.memory_space<vmem>>, vector<1x256xf32>
    %c1 = arith.constant 1 : index
    %c0_1 = arith.constant 0 : index
    %1 = vector.load %arg2[%c1, %c0_1] : memref<3x256xf32, #tpu.memory_space<vmem>>, vector<1x256xf32>
    %c2 = arith.constant 2 : index
    %c0_2 = arith.constant 0 : index
    %2 = vector.load %arg2[%c2, %c0_2] : memref<3x256xf32, #tpu.memory_space<vmem>>, vector<1x128xf32>
    %c0_3 = arith.constant 0 : index
    %c0_4 = arith.constant 0 : index
    %3 = vector.load %arg0[%c0_3, %c0_4] : memref<8x32xf32, #tpu.memory_space<vmem>>, vector<8x32xf32>
    %c0_5 = arith.constant 0 : index
    %c0_6 = arith.constant 0 : index
    %4 = vector.load %arg1[%c0_5, %c0_6] : memref<32x256xf32, #tpu.memory_space<vmem>>, vector<32x256xf32>
    %cst = arith.constant dense<0.000000e+00> : vector<8x256xf32>
    %5 = tpu.matmul %3, %4, %cst {dimension_numbers = #tpu.dot_dimension_numbers<[1], [0], [0], [1], [0, 0, 1, 1], [], []>} : vector<8x32xf32>, vector<32x256xf32>, vector<8x256xf32> -> vector<8x256xf32>
    %cst_7 = arith.constant dense<0.000000e+00> : vector<256xf32>
    %6 = vector.multi_reduction <add>, %5, %cst_7 [0] : vector<8x256xf32> to vector<256xf32>
    %7 = vector.shape_cast %6 : vector<256xf32> to vector<1x256xf32>
    %cst_8 = arith.constant 8.000000e+00 : f32
    %8 = vector.broadcast %cst_8 : f32 to vector<1x256xf32>
    %9 = arith.divf %7, %8 : vector<1x256xf32>
    %10 = vector.broadcast %9 : vector<1x256xf32> to vector<8x256xf32>
    %11 = arith.subf %5, %10 : vector<8x256xf32>
    %12 = arith.mulf %11, %11 : vector<8x256xf32>
    %cst_9 = arith.constant dense<0.000000e+00> : vector<256xf32>
    %13 = vector.multi_reduction <add>, %12, %cst_9 [0] : vector<8x256xf32> to vector<256xf32>
    %14 = vector.shape_cast %13 : vector<256xf32> to vector<1x256xf32>
    %cst_10 = arith.constant 8.000000e+00 : f32
    %15 = vector.broadcast %cst_10 : f32 to vector<1x256xf32>
    %16 = arith.divf %14, %15 : vector<1x256xf32>
    %cst_11 = arith.constant 9.99999974E-6 : f32
    %17 = vector.broadcast %cst_11 : f32 to vector<1x256xf32>
    %18 = arith.addf %16, %17 : vector<1x256xf32>
    %19 = math.rsqrt %18 : vector<1x256xf32>
    %20 = arith.mulf %19, %0 : vector<1x256xf32>
    %21 = vector.broadcast %20 : vector<1x256xf32> to vector<8x256xf32>
    %22 = arith.mulf %11, %21 : vector<8x256xf32>
    %23 = vector.broadcast %1 : vector<1x256xf32> to vector<8x256xf32>
    %24 = arith.addf %22, %23 : vector<8x256xf32>
    %c0_12 = arith.constant 0 : index
    %c0_13 = arith.constant 0 : index
    %25 = vector.load %arg4[%c0_12, %c0_13] : memref<8x256xf32, #tpu.memory_space<vmem>>, vector<8x256xf32>
    tpu.vector_store %arg4[%c0_12, %c0_13], %24 {strides = array<i32>} : memref<8x256xf32, #tpu.memory_space<vmem>>, vector<8x256xf32>,
    %c0_14 = arith.constant 0 : index
    %c0_15 = arith.constant 0 : index
    %26 = vector.load %arg3[%c0_14, %c0_15] : memref<256x128xf32, #tpu.memory_space<vmem>>, vector<256x128xf32>
    %cst_16 = arith.constant dense<0.000000e+00> : vector<8x128xf32>
    %27 = tpu.matmul %24, %26, %cst_16 {dimension_numbers = #tpu.dot_dimension_numbers<[1], [0], [0], [1], [0, 0, 1, 1], [], []>} : vector<8x256xf32>, vector<256x128xf32>, vector<8x128xf32> -> vector<8x128xf32>
    %28 = vector.broadcast %2 : vector<1x128xf32> to vector<8x128xf32>
    %29 = arith.addf %27, %28 : vector<8x128xf32>
    %c0_17 = arith.constant 0 : index
    %c0_18 = arith.constant 0 : index
    %30 = vector.load %arg5[%c0_17, %c0_18] : memref<8x128xf32, #tpu.memory_space<vmem>>, vector<8x128xf32>
    tpu.vector_store %arg5[%c0_17, %c0_18], %29 {strides = array<i32>} : memref<8x128xf32, #tpu.memory_space<vmem>>, vector<8x128xf32>,
    %cst_19 = arith.constant dense<0xFF800000> : vector<8xf32>
    %31 = vector.multi_reduction <maximumf>, %29, %cst_19 [1] : vector<8x128xf32> to vector<8xf32>
    %32 = vector.shape_cast %31 : vector<8xf32> to vector<8x1xf32>
    %33 = vector.broadcast %32 : vector<8x1xf32> to vector<8x128xf32>
    %34 = arith.subf %29, %33 : vector<8x128xf32>
    %35 = math.exp %34 : vector<8x128xf32>
    %cst_20 = arith.constant dense<0.000000e+00> : vector<8xf32>
    %36 = vector.multi_reduction <add>, %35, %cst_20 [1] : vector<8x128xf32> to vector<8xf32>
    %37 = vector.shape_cast %36 : vector<8xf32> to vector<8x1xf32>
    %38 = vector.broadcast %37 : vector<8x1xf32> to vector<8x128xf32>
    %39 = arith.divf %35, %38 : vector<8x128xf32>
    %c0_21 = arith.constant 0 : index
    %c0_22 = arith.constant 0 : index
    %40 = vector.load %arg6[%c0_21, %c0_22] : memref<8x128xf32, #tpu.memory_space<vmem>>, vector<8x128xf32>
    tpu.vector_store %arg6[%c0_21, %c0_22], %39 {strides = array<i32>} : memref<8x128xf32, #tpu.memory_space<vmem>>, vector<8x128xf32>,
    return
  }
}

</mosaic_0001>

<llo_original>
// kernel: cls_forward.1
$region0: #{cls_forward.1}
  #allocation0 [shape = 'u32[]', space=smem, size = 0x4, offset = 0x4, fixed_abs, tag = 'smem constant byte address 0x4 - core index']
  #allocation1 [shape = 'u32[144,128]{1,0:T(1,128)}', space=vmem, size = 0x12000, scoped, tag = 'internal scratch']
  %s0 = inlined_call_operand.vmem [shape: f32[8,32], index: 0, kind: input, shape index: {}]
  %s1 = inlined_call_operand.hbm [shape: f32[32,256], index: 1, kind: input, shape index: {}]
  %s2 = inlined_call_operand.hbm [shape: f32[3,256], index: 2, kind: input, shape index: {}]
  %s3 = inlined_call_operand.hbm [shape: f32[256,128], index: 3, kind: input, shape index: {}]
  %s4 = inlined_call_operand.hbm [shape: f32[8,256], index: 4, kind: output, shape index: {0}]
  %s5 = inlined_call_operand.hbm [shape: f32[8,128], index: 5, kind: output, shape index: {1}]
  %s6 = inlined_call_operand.hbm [shape: f32[8,128], index: 6, kind: output, shape index: {2}]
  %7 = xla_tuple %s4, %s5, %s6
  %s8 = sld [smem:[#allocation0]]
  $region54: #{cls_forward.1} parent=0
    _
  %s10 = ssub.s32 1, %s8
  %s11 = scalar_select 0, %s10, %s8
  $region1: #{cls_forward.1} parent=0
    #allocation2 [shape = 'u8[32768]{0}', space=vmem, size = 0x8000, scoped, tag = 'input window, operand 1, single buffered']
    #allocation3 [shape = 's32[1]{0}', space=sflag, size = 0x4, scoped, tag = 'scoped memory for cls_forward.1']
    #allocation4 [shape = 's32[1]{0}', space=sflag, size = 0x4, scoped, tag = 'scoped memory for cls_forward.1']
    #allocation5 [shape = 'u8[4096]{0}', space=vmem, size = 0x1000, scoped, tag = 'input window, operand 2, single buffered']
    #allocation6 [shape = 's32[1]{0}', space=sflag, size = 0x4, scoped, tag = 'scoped memory for cls_forward.1']
    #allocation7 [shape = 'u8[131072]{0}', space=vmem, size = 0x20000, scoped, tag = 'input window, operand 3, single buffered']
    #allocation8 [shape = 'u8[8192]{0}', space=vmem, size = 0x2000, scoped, tag = 'output window, operand 0, single buffered']
    #allocation9 [shape = 'u8[4096]{0}', space=vmem, size = 0x1000, scoped, tag = 'output window, operand 1, single buffered']
    #allocation10 [shape = 's32[1]{0}', space=sflag, size = 0x4, scoped, tag = 'scoped memory for cls_forward.1']
    #allocation11 [shape = 'u8[4096]{0}', space=vmem, size = 0x1000, scoped, tag = 'output window, operand 2, single buffered']
    %12 = vsyncpa [#allocation3], 0
    %13 = vsyncpa [#allocation6], 0
    %14 = vsyncpa [#allocation4], 0
    %15 = vsyncpa [#allocation10], 0
    // Predicated region
    $region2: #{cls_forward.1} parent=1 // pred_check
      _
    $region3: #{cls_forward.1} parent=1 // pred_check_branch
      %17 = sbr.rel (0) target = $region5
    $region4: #{cls_forward.1} parent=1 // pred_region
      _
    $region5: #{cls_forward.1} parent=1 // pred_fallthru
      _
    // Predicated region
    $region6: #{cls_forward.1} parent=1 // pred_check
      _
    $region7: #{cls_forward.1} parent=1 // pred_check_branch
      %19 = sbr.rel (0) target = $region9
    $region8: #{cls_forward.1} parent=1 // pred_region
      %s21 = ssub.s32 1024, 1024
      %22 = vsyncadd [#allocation3], %s21
      %s23 = sshll.u32 [#allocation2], 4
      %s24 = int_to_ptr.vmem [resolvable:$true] %s23
      %29 = dma.hbm_to_vmem [thread:$0]  %s1, 1024, %s24, [#allocation3], 256, 256, 16
    $region9: #{cls_forward.1} parent=1 // pred_fallthru
      _
    // Predicated region
    $region10: #{cls_forward.1} parent=1 // pred_check
      _
    $region11: #{cls_forward.1} parent=1 // pred_check_branch
      %31 = sbr.rel (0) target = $region13
    $region12: #{cls_forward.1} parent=1 // pred_region
      %s33 = ssub.s32 128, 128
      %34 = vsyncadd [#allocation6], %s33
      %s36 = sshll.u32 [#allocation5], 4
      %s37 = int_to_ptr.vmem [resolvable:$true] %s36
      %39 = dma.hbm_to_vmem [thread:$0]  %s2, 128, %s37, [#allocation6]
    $region13: #{cls_forward.1} parent=1 // pred_fallthru
      _
    // Predicated region
    $region14: #{cls_forward.1} parent=1 // pred_check
      _
    $region15: #{cls_forward.1} parent=1 // pred_check_branch
      %41 = sbr.rel (0) target = $region17
    $region16: #{cls_forward.1} parent=1 // pred_region
      %s43 = ssub.s32 4096, 4096
      %44 = vsyncadd [#allocation6], %s43
      %s45 = sshll.u32 [#allocation7], 4
      %s46 = int_to_ptr.vmem [resolvable:$true] %s45
      %51 = dma.hbm_to_vmem [thread:$0]  %s3, 4096, %s46, [#allocation6], 128, 128, 8
    $region17: #{cls_forward.1} parent=1 // pred_fallthru
      _
    // Predicated region
    $region18: #{cls_forward.1} parent=1 // pred_check
      _
    $region19: #{cls_forward.1} parent=1 // pred_check_branch
      %53 = sbr.rel (0) target = $region21
    $region20: #{cls_forward.1} parent=1 // pred_region
      %54 = dma.done [#allocation3], 1024
    $region21: #{cls_forward.1} parent=1 // pred_fallthru
      _
    // Predicated region
    $region22: #{cls_forward.1} parent=1 // pred_check
      _
    $region23: #{cls_forward.1} parent=1 // pred_check_branch
      %56 = sbr.rel (0) target = $region25
    $region24: #{cls_forward.1} parent=1 // pred_region
      %57 = dma.done [#allocation6], 128
    $region25: #{cls_forward.1} parent=1 // pred_fallthru
      _
    // Predicated region
    $region26: #{cls_forward.1} parent=1 // pred_check
      _
    $region27: #{cls_forward.1} parent=1 // pred_check_branch
      %59 = sbr.rel (0) target = $region29
    $region28: #{cls_forward.1} parent=1 // pred_region
      %60 = dma.done [#allocation6], 4096
    $region29: #{cls_forward.1} parent=1 // pred_fallthru
      _
    %v61 = vld [vmem:[#allocation5] ss:$4 sm:$0x3]
    %s62 = scalar_lea.vmem [#allocation5], 1
    %v63 = vld [vmem:[%s62] ss:$4 sm:$0x3]
    %v64 = vld [vmem:[#allocation5 + $0x2] sm:$0x1]
    %v65 = vld [vmem:[%s0] sm:$0xff]
    %v66 = vld [vmem:[#allocation2] sm:$0xff]
    %v67 = vld [vmem:[#allocation2 + $0x8] sm:$0xff]
    %v68 = vld [vmem:[#allocation2 + $0x10] sm:$0xff]
    %v69 = vld [vmem:[#allocation2 + $0x18] sm:$0xff]
    %v70 = vld [vmem:[#allocation2 + $0x20] sm:$0xff]
    %v71 = vld [vmem:[#allocation2 + $0x28] sm:$0xff]
    %v72 = vld [vmem:[#allocation2 + $0x30] sm:$0xff]
    %v73 = vld [vmem:[#allocation2 + $0x38] sm:$0xff]
    %vm74 = vcmask 261120
    %v76 = vsel %vm74, %v65, 0
    %78 = vmatprep.subr.mxu0 %v67
    %79 = vmatpush1.msra.mxu0 %v66
    %80 = vmatprep.subr.mxu0 %v69
    %81 = vmatpush1.msra.mxu0 %v68
    %82 = vmatprep.subr.mxu0 %v71
    %83 = vmatpush1.msra.mxu0 %v70
    %84 = vmatprep.subr.mxu0 %v73
    %85 = vmatpush1.msra.mxu0 %v72
    %86 = vmatprep.subr.mxu0 0.0
    %87 = vmatpush1.msra.mxu0 0.0
    %88 = vmatprep.subr.mxu0 0.0
    %89 = vmatpush1.msra.mxu0 0.0
    %90 = vmatprep.subr.mxu0 0.0
    %91 = vmatpush1.msra.mxu0 0.0
    %92 = vmatprep.subr.mxu0 0.0
    %93 = vmatpush1.msra.mxu0 0.0
    %94 = vmatprep.subr.mxu0 0.0
    %95 = vmatpush1.msra.mxu0 0.0
    %96 = vmatprep.subr.mxu0 0.0
    %97 = vmatpush1.msra.mxu0 0.0
    %98 = vmatprep.subr.mxu0 0.0
    %99 = vmatpush1.msra.mxu0 0.0
    %100 = vmatprep.subr.mxu0 0.0
    %101 = vmatpush1.msra.mxu0 0.0
    %102 = vmatprep.subr.mxu0 0.0
    %103 = vmatpush1.msra.mxu0 0.0
    %104 = vmatprep.subr.mxu0 0.0
    %105 = vmatpush1.msra.mxu0 0.0
    %106 = vmatprep.subr.mxu0 0.0
    %107 = vmatpush1.msra.mxu0 0.0
    %108 = vmatprep.subr.mxu0 0.0
    %109 = vmatpush1.msra.mxu0 0.0
    %110 = vmatprep.subr.mxu0 0.0
    %111 = vmatpush1.msra.mxu0 0.0
    %112 = vmatprep.subr.mxu0 0.0
    %113 = vmatpush1.msra.mxu0 0.0
    %114 = vmatprep.subr.mxu0 0.0
    %115 = vmatpush1.msra.mxu0 0.0
    %116 = vmatprep.subr.mxu0 0.0
    %117 = vmatpush1.msra.mxu0 0.0
    %118 = vmatprep.subr.mxu0 0.0
    %119 = vmatpush1.msra.mxu0 0.0
    %120 = vmatprep.subr.mxu0 0.0
    %121 = vmatpush1.msra.mxu0 0.0
    %122 = vmatprep.subr.mxu0 0.0
    %123 = vmatpush1.msra.mxu0 0.0
    %124 = vmatprep.subr.mxu0 0.0
    %125 = vmatpush1.msra.mxu0 0.0
    %126 = vmatprep.subr.mxu0 0.0
    %127 = vmatpush1.msra.mxu0 0.0
    %128 = vmatprep.subr.mxu0 0.0
    %129 = vmatpush1.msra.mxu0 0.0
    %130 = vmatprep.subr.mxu0 0.0
    %131 = vmatpush1.msra.mxu0 0.0
    %132 = vmatprep.subr.mxu0 0.0
    %133 = vmatpush1.msra.mxu0 0.0
    %134 = vmatprep.subr.mxu0 0.0
    %135 = vmatpush1.msra.mxu0 0.0
    %136 = vmatprep.subr.mxu0 0.0
    %137 = vmatpush1.msra.mxu0 0.0
    %138 = vmatprep.subr.mxu0 0.0
    %139 = vmatpush1.msra.mxu0 0.0
    %140 = vmatprep.subr.mxu0 0.0
    %141 = vmatpush1.msra.mxu0 0.0
    %142 = vmatprep.mubr.f32.mxu0 0.0
    %143 = vmatmul.mubr.f32.gmra.mrb[0].mxu0 %v76
    %v144 = vpop.f32.mrb[0].mxu0
    %v145 = vadd.f32 0.0, %v144
    %v146 = vpop.f32.mrb[0].mxu0
    %v147 = vadd.f32 0.0, %v146
    %148 = vdwg.mxu0
    %v149 = vrot.slane %v145, 4
    %v150 = vadd.f32 %v145, %v149
    %v151 = vrot.slane %v150, 2
    %v152 = vadd.f32 %v150, %v151
    %v153 = vrot.slane %v152, 1
    %v154 = vadd.f32 %v152, %v153
    %v155 = vrot.slane %v147, 4
    %v156 = vadd.f32 %v147, %v155
    %v157 = vrot.slane %v156, 2
    %v158 = vadd.f32 %v156, %v157
    %v159 = vrot.slane %v158, 1
    %v160 = vadd.f32 %v158, %v159
    %v161 = vrcp.pop 8.0
    %v162 = vmul.f32 %v154, %v161
    %v163 = vmul.f32 %v160, %v161
    %v164 = vsub.f32 %v145, %v162
    %v165 = vsub.f32 %v147, %v163
    %v166 = vmul.f32 %v164, %v164
    %v167 = vmul.f32 %v165, %v165
    %v168 = vrot.slane %v166, 4
    %v169 = vadd.f32 %v166, %v168
    %v170 = vrot.slane %v169, 2
    %v171 = vadd.f32 %v169, %v170
    %v172 = vrot.slane %v171, 1
    %v173 = vadd.f32 %v171, %v172
    %v174 = vrot.slane %v167, 4
    %v175 = vadd.f32 %v167, %v174
    %v176 = vrot.slane %v175, 2
    %v177 = vadd.f32 %v175, %v176
    %v178 = vrot.slane %v177, 1
    %v179 = vadd.f32 %v177, %v178
    %v180 = vmul.f32 %v173, %v161
    %v181 = vmul.f32 %v179, %v161
    %v182 = vadd.f32 %v180, 1e-05
    %v183 = vadd.f32 %v181, 1e-05
    %v184 = vrsqrt.pop %v182
    %v185 = vrsqrt.pop %v183
    %v187 = vlaneseq
    %v188 = vshrl.u32 %v187, 7
    %v189 = vsub.s32 0, %v188
    %v190 = vrot.slane %v61, %v189
    %v191 = vlaneseq
    %v192 = vshrl.u32 %v191, 7
    %v193 = vsub.s32 1, %v192
    %v194 = vrot.slane %v61, %v193
    %v197 = vmul.f32 %v184, %v190
    %v198 = vmul.f32 %v185, %v194
    %v199 = vlaneseq
    %v200 = vshrl.u32 %v199, 7
    %v201 = vsub.s32 0, %v200
    %v202 = vrot.slane %v197, %v201
    %v203 = vlaneseq
    %v204 = vshrl.u32 %v203, 7
    %v205 = vsub.s32 0, %v204
    %v206 = vrot.slane %v198, %v205
    %v207 = vmul.f32 %v164, %v202
    %v208 = vmul.f32 %v165, %v206
    %v210 = vlaneseq
    %v211 = vshrl.u32 %v210, 7
    %v212 = vsub.s32 0, %v211
    %v213 = vrot.slane %v63, %v212
    %v214 = vlaneseq
    %v215 = vshrl.u32 %v214, 7
    %v216 = vsub.s32 1, %v215
    %v217 = vrot.slane %v63, %v216
    %v220 = vadd.f32 %v207, %v213
    %v221 = vadd.f32 %v208, %v217
    %222 = vst [vmem:[#allocation8] sm:$0xff] %v220
    %223 = vst [vmem:[#allocation8 + $0x8] sm:$0xff] %v221
    %v224 = vld [vmem:[#allocation7] sm:$0xff]
    %v225 = vld [vmem:[#allocation7 + $0x8] sm:$0xff]
    %v226 = vld [vmem:[#allocation7 + $0x10] sm:$0xff]
    %v227 = vld [vmem:[#allocation7 + $0x18] sm:$0xff]
    %v228 = vld [vmem:[#allocation7 + $0x20] sm:$0xff]
    %v229 = vld [vmem:[#allocation7 + $0x28] sm:$0xff]
    %v230 = vld [vmem:[#allocation7 + $0x30] sm:$0xff]
    %v231 = vld [vmem:[#allocation7 + $0x38] sm:$0xff]
    %v232 = vld [vmem:[#allocation7 + $0x40] sm:$0xff]
    %v233 = vld [vmem:[#allocation7 + $0x48] sm:$0xff]
    %v234 = vld [vmem:[#allocation7 + $0x50] sm:$0xff]
    %v235 = vld [vmem:[#allocation7 + $0x58] sm:$0xff]
    %v236 = vld [vmem:[#allocation7 + $0x60] sm:$0xff]
    %v237 = vld [vmem:[#allocation7 + $0x68] sm:$0xff]
    %v238 = vld [vmem:[#allocation7 + $0x70] sm:$0xff]
    %v239 = vld [vmem:[#allocation7 + $0x78] sm:$0xff]
    %v240 = vld [vmem:[#allocation7 + $0x80] sm:$0xff]
    %v241 = vld [vmem:[#allocation7 + $0x88] sm:$0xff]
    %v242 = vld [vmem:[#allocation7 + $0x90] sm:$0xff]
    %v243 = vld [vmem:[#allocation7 + $0x98] sm:$0xff]
    %v244 = vld [vmem:[#allocation7 + $0xa0] sm:$0xff]
    %v245 = vld [vmem:[#allocation7 + $0xa8] sm:$0xff]
    %v246 = vld [vmem:[#allocation7 + $0xb0] sm:$0xff]
    %v247 = vld [vmem:[#allocation7 + $0xb8] sm:$0xff]
    %v248 = vld [vmem:[#allocation7 + $0xc0] sm:$0xff]
    %v249 = vld [vmem:[#allocation7 + $0xc8] sm:$0xff]
    %v250 = vld [vmem:[#allocation7 + $0xd0] sm:$0xff]
    %v251 = vld [vmem:[#allocation7 + $0xd8] sm:$0xff]
    %v252 = vld [vmem:[#allocation7 + $0xe0] sm:$0xff]
    %v253 = vld [vmem:[#allocation7 + $0xe8] sm:$0xff]
    %v254 = vld [vmem:[#allocation7 + $0xf0] sm:$0xff]
    %v255 = vld [vmem:[#allocation7 + $0xf8] sm:$0xff]
    %v256 = vlaneseq
    %v257 = vshrl.u32 %v256, 7
    %v258 = vsub.s32 0, %v257
    %v259 = vrot.slane %v64, %v258
    %260 = vmatprep.subr.mxu0 0.0
    %261 = vmatpush1.msra.mxu0 %v224
    %262 = vmatprep.subr.mxu0 0.0
    %263 = vmatpush1.msra.mxu0 %v225
    %264 = vmatprep.subr.mxu0 0.0
    %265 = vmatpush1.msra.mxu0 %v226
    %266 = vmatprep.subr.mxu0 0.0
    %267 = vmatpush1.msra.mxu0 %v227
    %268 = vmatprep.subr.mxu0 0.0
    %269 = vmatpush1.msra.mxu0 %v228
    %270 = vmatprep.subr.mxu0 0.0
    %271 = vmatpush1.msra.mxu0 %v229
    %272 = vmatprep.subr.mxu0 0.0
    %273 = vmatpush1.msra.mxu0 %v230
    %274 = vmatprep.subr.mxu0 0.0
    %275 = vmatpush1.msra.mxu0 %v231
    %276 = vmatprep.subr.mxu0 0.0
    %277 = vmatpush1.msra.mxu0 %v232
    %278 = vmatprep.subr.mxu0 0.0
    %279 = vmatpush1.msra.mxu0 %v233
    %280 = vmatprep.subr.mxu0 0.0
    %281 = vmatpush1.msra.mxu0 %v234
    %282 = vmatprep.subr.mxu0 0.0
    %283 = vmatpush1.msra.mxu0 %v235
    %284 = vmatprep.subr.mxu0 0.0
    %285 = vmatpush1.msra.mxu0 %v236
    %286 = vmatprep.subr.mxu0 0.0
    %287 = vmatpush1.msra.mxu0 %v237
    %288 = vmatprep.subr.mxu0 0.0
    %289 = vmatpush1.msra.mxu0 %v238
    %290 = vmatprep.subr.mxu0 0.0
    %291 = vmatpush1.msra.mxu0 %v239
    %292 = vmatprep.subr.mxu0 0.0
    %293 = vmatpush1.msra.mxu0 %v240
    %294 = vmatprep.subr.mxu0 0.0
    %295 = vmatpush1.msra.mxu0 %v241
    %296 = vmatprep.subr.mxu0 0.0
    %297 = vmatpush1.msra.mxu0 %v242
    %298 = vmatprep.subr.mxu0 0.0
    %299 = vmatpush1.msra.mxu0 %v243
    %300 = vmatprep.subr.mxu0 0.0
    %301 = vmatpush1.msra.mxu0 %v244
    %302 = vmatprep.subr.mxu0 0.0
    %303 = vmatpush1.msra.mxu0 %v245
    %304 = vmatprep.subr.mxu0 0.0
    %305 = vmatpush1.msra.mxu0 %v246
    %306 = vmatprep.subr.mxu0 0.0
    %307 = vmatpush1.msra.mxu0 %v247
    %308 = vmatprep.subr.mxu0 0.0
    %309 = vmatpush1.msra.mxu0 %v248
    %310 = vmatprep.subr.mxu0 0.0
    %311 = vmatpush1.msra.mxu0 %v249
    %312 = vmatprep.subr.mxu0 0.0
    %313 = vmatpush1.msra.mxu0 %v250
    %314 = vmatprep.subr.mxu0 0.0
    %315 = vmatpush1.msra.mxu0 %v251
    %316 = vmatprep.subr.mxu0 0.0
    %317 = vmatpush1.msra.mxu0 %v252
    %318 = vmatprep.subr.mxu0 0.0
    %319 = vmatpush1.msra.mxu0 %v253
    %320 = vmatprep.subr.mxu0 0.0
    %321 = vmatpush1.msra.mxu0 %v254
    %322 = vmatprep.subr.mxu0 0.0
    %323 = vmatpush1.msra.mxu0 %v255
    %324 = vmatprep.mubr.f32.mxu0 %v221
    %325 = vmatmul.mubr.f32.gmra.mrb[0].mxu0 %v220
    %v326 = vpop.f32.mrb[0].mxu0
    %v327 = vadd.f32 %v259, %v326
    %v328 = vpop.f32.mrb[0].mxu0
    %329 = vdwg.mxu0
    %330 = vst [vmem:[#allocation9] sm:$0xff] %v327
    %331 = vmax.xlane.f32.xlu0 %v327
    %v332 = vpop.xlane.xlu0 %331
    %v333 = vsub.f32 %v327, %v332
    %v334 = vmul.f32 %v333, 1.442695
    %v335 = vpow.pop %v334
    %336 = vadd.xlane.f32.xlu0 %v335
    %v337 = vpop.xlane.xlu0 %336
    %v338 = vrcp.pop %v337
    %v339 = vmul.f32 %v335, %v338
    %340 = vst [vmem:[#allocation11] sm:$0xff] %v339
    // Predicated region
    $region30: #{cls_forward.1} parent=1 // pred_check
      _
    $region31: #{cls_forward.1} parent=1 // pred_check_branch
      %342 = sbr.rel (0) target = $region33
    $region32: #{cls_forward.1} parent=1 // pred_region
      %s344 = ssub.s32 256, 256
      %345 = vsyncadd [#allocation4], %s344
      %s347 = sshll.u32 [#allocation8], 4
      %s348 = int_to_ptr.vmem [resolvable:$true] %s347
      %350 = dma.vmem_to_hbm [thread:$0]  %s348, 256, %s4, [#allocation4]
    $region33: #{cls_forward.1} parent=1 // pred_fallthru
      _
    // Predicated region
    $region34: #{cls_forward.1} parent=1 // pred_check
      _
    $region35: #{cls_forward.1} parent=1 // pred_check_branch
      %352 = sbr.rel (0) target = $region37
    $region36: #{cls_forward.1} parent=1 // pred_region
      %s354 = ssub.s32 128, 128
      %355 = vsyncadd [#allocation10], %s354
      %s357 = sshll.u32 [#allocation9], 4
      %s358 = int_to_ptr.vmem [resolvable:$true] %s357
      %360 = dma.vmem_to_hbm [thread:$0]  %s358, 128, %s5, [#allocation10]
    $region37: #{cls_forward.1} parent=1 // pred_fallthru
      _
    // Predicated region
    $region38: #{cls_forward.1} parent=1 // pred_check
      _
    $region39: #{cls_forward.1} parent=1 // pred_check_branch
      %362 = sbr.rel (0) target = $region41
    $region40: #{cls_forward.1} parent=1 // pred_region
      %s364 = ssub.s32 128, 128
      %365 = vsyncadd [#allocation10], %s364
      %s367 = sshll.u32 [#allocation11], 4
      %s368 = int_to_ptr.vmem [resolvable:$true] %s367
      %370 = dma.vmem_to_hbm [thread:$0]  %s368, 128, %s6, [#allocation10]
    $region41: #{cls_forward.1} parent=1 // pred_fallthru
      _
    // Predicated region
    $region42: #{cls_forward.1} parent=1 // pred_check
      _
    $region43: #{cls_forward.1} parent=1 // pred_check_branch
      %372 = sbr.rel (0) target = $region45
    $region44: #{cls_forward.1} parent=1 // pred_region
      %373 = dma.done [#allocation4], 256
    $region45: #{cls_forward.1} parent=1 // pred_fallthru
      _
    // Predicated region
    $region46: #{cls_forward.1} parent=1 // pred_check
      _
    $region47: #{cls_forward.1} parent=1 // pred_check_branch
      %375 = sbr.rel (0) target = $region49
    $region48: #{cls_forward.1} parent=1 // pred_region
      %376 = dma.done [#allocation10], 128
    $region49: #{cls_forward.1} parent=1 // pred_fallthru
      _
    // Predicated region
    $region50: #{cls_forward.1} parent=1 // pred_check
      _
    $region51: #{cls_forward.1} parent=1 // pred_check_branch
      %378 = sbr.rel (0) target = $region53
    $region52: #{cls_forward.1} parent=1 // pred_region
      %379 = dma.done [#allocation10], 128
    $region53: #{cls_forward.1} parent=1 // pred_fallthru
      _
    %380 = vsyncpa [#allocation3], 1
    %381 = vsyncpa [#allocation6], 1
    %382 = vsyncpa [#allocation4], 1
    %383 = vsyncpa [#allocation10], 1

</llo_original>
